<compile_context>
chip_gen: v7x
topology: tpu7x:2x2x1
jax: 0.10.0
libtpu: 0.0.40
codegen_flags: <defaults>
</compile_context>

<pallas_src>
import jax
import jax.numpy as jnp
from jax.experimental import pallas as pl
from jax.experimental.pallas import tpu as pltpu


# --------------------------------------------------------------------------- #
# Kernels
# --------------------------------------------------------------------------- #
def _mean_pool_kernel_vpu(x_ref, mt_ref, d_ref, o_ref, sum_acc):
    """float32 path: exact VPU masked reduction (no MXU multi-pass).

    x_ref:   (tb, ts, H)  f32 hidden-state tile
    mt_ref:  (1, ts, tb)  f32 mask tile, sequence on sublanes, batch on lanes
    d_ref:   (tb, 1, 1)   f32 clamped valid-token count (from the wrapper)
    o_ref:   (tb, 1, H)   f32 output tile, written on the last sequence step
    sum_acc: (tb, 1, H)   f32 VMEM accumulator (masked sum over S)
    """
    k = pl.program_id(1)

    @pl.when(k == 0)
    def _init():
        sum_acc[...] = jnp.zeros_like(sum_acc)

    mt = mt_ref[0]                          # (ts, tb), seq on sublanes
    tb = x_ref.shape[0]
    for j in range(tb):                     # static unroll, tb <= 8
        mj = mt[:, j:j + 1]                 # (ts, 1)  mask column for row j
        xj = x_ref[j]                       # (ts, H)
        # Broadcast-multiply over H lanes, reduce over the sequence sublanes.
        sum_acc[j] += jnp.sum(xj * mj, axis=0, keepdims=True)      # (1, H)

    @pl.when(k == pl.num_programs(1) - 1)
    def _finalize():
        o_ref[...] = (sum_acc[...] / d_ref[...]).astype(o_ref.dtype)


def _mean_pool_kernel_mxu(x_ref, m_ref, d_ref, o_ref, sum_acc):
    """sub-32-bit path (bf16/fp16): single-pass MXU matmul, f32 accumulate.

    x_ref:   (tb, ts, H)  hidden-state tile, input dtype
    m_ref:   (tb, 1, ts)  mask tile in the input dtype (exact for {0,1})
    d_ref:   (tb, 1, 1)   f32 clamped valid-token count
    o_ref:   (tb, 1, H)   f32 output tile
    sum_acc: (tb, 1, H)   f32 VMEM accumulator
    """
    k = pl.program_id(1)

    @pl.when(k == 0)
    def _init():
        sum_acc[...] = jnp.zeros_like(sum_acc)

    # Batched (1, ts) @ (ts, H) on the MXU; multiply in the input dtype,
    # accumulate in f32.
    sum_acc[...] += jnp.einsum(
        "bqs,bsh->bqh", m_ref[...], x_ref[...],
        preferred_element_type=jnp.float32)

    @pl.when(k == pl.num_programs(1) - 1)
    def _finalize():
        o_ref[...] = (sum_acc[...] / d_ref[...]).astype(o_ref.dtype)


# --------------------------------------------------------------------------- #
# Planning helpers
# --------------------------------------------------------------------------- #
def _vmem_limit_bytes():
    """Generation-aware scoped-VMEM limit (v5e/v6e: 128 MiB phys, v7x: 64 MiB)."""
    cap = 64 * 1024 * 1024                      # conservative default (v7x)
    try:
        info = pltpu.get_tpu_info()
        cap = int(getattr(info, "vmem_capacity_bytes", cap)) or cap
    except Exception:
        pass
    # ~75% of physical, capped at 96 MiB, floored at 32 MiB.
    return max(32 * 1024 * 1024, min(int(cap * 0.75), 96 * 1024 * 1024))


def _plan_tiles(B, S, H, itemsize, vmem_limit, align):
    """Pick (tb, ts, s_pad) so all double-buffered blocks fit the VMEM budget.

    align: required sequence-tile alignment when ts < S (8 for the f32/VPU
    path, 128 for the MXU path whose mask block puts S on the lane axis).
    """
    usable = int(vmem_limit * 0.85)             # headroom for compiler scratch

    divisors = [d for d in range(min(B, 8), 0, -1) if B % d == 0]
    if B >= 4:
        # Prefer >= 2 batch blocks: keeps both TensorCores busy on dual-core
        # chips (v7x); on single-core chips it only adds a few big grid steps.
        split = [d for d in divisors if B // d >= 2]
        pref = split + [d for d in divisors if d not in split]
    else:
        pref = divisors

    def blocks_bytes(tb, ts):
        x_blk = tb * ts * H * itemsize
        # Mask block, conservative max over the two layouts:
        #   f32 path:  (1, ts, tb)  -> lane-padded to (ts, 128) f32
        #   MXU path:  (tb, 1, ts)  -> sublane-padded to (tb, 8, ts)
        mask_blk = ts * max(512, 8 * tb * itemsize)
        out_blk = tb * 8 * H * 4
        scratch = tb * 8 * H * 4
        return 2 * (x_blk + mask_blk) + 2 * out_blk + scratch

    # 1) Whole sequence per step if it fits (full-extent block: no alignment
    #    constraint on ts, no padding).
    for tb in pref:
        if blocks_bytes(tb, S) <= usable:
            return tb, S, S

    # 2) Split the sequence into aligned tiles as large as the budget allows;
    #    prefer an exact divisor of S, otherwise pad S (zero mask => exact).
    for tb in pref:
        fixed = 3 * tb * 8 * H * 4
        slope = 2 * (tb * H * itemsize + max(512, 8 * tb * itemsize))
        ts_max = (usable - fixed) // slope
        ts_max = min(ts_max, ((S + align - 1) // align) * align)
        ts_max = (ts_max // align) * align
        if ts_max < align:
            continue
        for cand in range(ts_max, max(ts_max // 2, align - 1), -align):
            if S % cand == 0:
                return tb, cand, S
        s_pad = ((S + ts_max - 1) // ts_max) * ts_max
        return tb, ts_max, s_pad

    # 3) Pathological fallback (enormous H): one batch row, minimal tile.
    ts = align
    return 1, ts, ((S + ts - 1) // ts) * ts


# --------------------------------------------------------------------------- #
# Public wrapper
# --------------------------------------------------------------------------- #
def mean_pooling(last_hidden_state, attention_mask):
    """Pallas equivalent of MeanPooling.forward.

    last_hidden_state: (B, S, H) float array
    attention_mask:    (B, S)    int/float {0,1} array
    returns:           (B, H)    float32 masked-mean embeddings
    """
    x = last_hidden_state
    B, S, H = x.shape
    itemsize = jnp.dtype(x.dtype).itemsize
    use_vpu = x.dtype == jnp.float32

    vmem_limit = _vmem_limit_bytes()
    align = 8 if use_vpu else 128
    tb, ts, s_pad = _plan_tiles(B, S, H, itemsize, vmem_limit, align)
    nb, nk = B // tb, s_pad // ts

    # Denominator (clamped valid-token count), computed once in the wrapper —
    # exact, and removes the per-step in-kernel count reduction.
    mask_f32 = attention_mask.astype(jnp.float32)
    denom = jnp.maximum(jnp.sum(mask_f32, axis=1), 1e-9).reshape(B, 1, 1)

    if s_pad != S:
        # Rare fallback for awkward sequence lengths (costs one extra copy of
        # x); zero-mask padding keeps the semantics exact.
        x = jnp.pad(x, ((0, 0), (0, s_pad - S), (0, 0)))
        mask_f32 = jnp.pad(mask_f32, ((0, 0), (0, s_pad - S)))

    if use_vpu:
        # f32: exact VPU masked reduction.  The mask is pre-transposed to
        # (nb, S, tb) so the sequence axis lands on sublanes (aligned with the
        # x tile) and each batch row is a static lane slice in the kernel.
        mask_in = mask_f32.reshape(nb, tb, s_pad).transpose(0, 2, 1)  # (nb,S,tb)
        kernel = _mean_pool_kernel_vpu
        mask_spec = pl.BlockSpec((1, ts, tb), lambda b, k: (b, k, 0))
    else:
        # bf16/fp16: single-pass MXU batched matmul (v5e has no bf16 VPU);
        # mask pre-cast to the input dtype (exact for {0,1}), S on lanes.
        mask_in = mask_f32.astype(x.dtype).reshape(B, 1, s_pad)       # (B,1,S)
        kernel = _mean_pool_kernel_mxu
        mask_spec = pl.BlockSpec((tb, 1, ts), lambda b, k: (b, 0, k))

    out = pl.pallas_call(
        kernel,
        out_shape=jax.ShapeDtypeStruct((B, 1, H), jnp.float32),
        grid=(nb, nk),
        in_specs=[
            pl.BlockSpec((tb, ts, H), lambda b, k: (b, k, 0)),   # hidden states
            mask_spec,                                            # mask
            pl.BlockSpec((tb, 1, 1), lambda b, k: (b, 0, 0)),     # denominator
        ],
        out_specs=pl.BlockSpec((tb, 1, H), lambda b, k: (b, 0, 0)),
        scratch_shapes=[pltpu.VMEM((tb, 1, H), jnp.float32)],     # sum accumulator
        compiler_params=pltpu.CompilerParams(
            dimension_semantics=("parallel", "arbitrary"),
            vmem_limit_bytes=vmem_limit),
        cost_estimate=pl.CostEstimate(
            flops=2 * B * S * H,
            transcendentals=0,
            bytes_accessed=(x.size * itemsize
                            + mask_in.size * mask_in.dtype.itemsize
                            + B * 4 + B * H * 4)),
    )(x, mask_in, denom)

    # (B, 1, H) -> (B, H): free relayout outside the kernel.  (A 2-D (tb, H)
    # out block would violate the (8,128) block rule whenever tb < 8 < B.)
    return out.reshape(B, H)


# --------------------------------------------------------------------------- #
# Self-test
# --------------------------------------------------------------------------- #
if __name__ == "__main__":
    key = jax.random.PRNGKey(0)
    k_x, k_m = jax.random.split(key)

    B, S, H = 2, 8, 32
    last_hidden_state = jax.random.normal(k_x, (B, S, H), dtype=jnp.float32)
    # Binary attention mask, like a padded-sequence mask (int32 as in HF/PyTorch).
    attention_mask = (jax.random.uniform(k_m, (B, S)) > 0.3).astype(jnp.int32)
    # Guarantee at least one valid token per row (mirrors realistic inputs).
    attention_mask = attention_mask.at[:, 0].set(1)

    result = mean_pooling(last_hidden_state, attention_mask)
    jax.block_until_ready(result)

    # Sanity check against a plain-JAX reference of the PyTorch semantics.
    m = attention_mask[..., None].astype(jnp.float32)
    ref = (last_hidden_state * m).sum(1) / jnp.maximum(m.sum(1), 1e-9)
    assert jnp.allclose(result, ref, atol=1e-4, rtol=1e-4)

    print("KERNEL_OK")
</pallas_src>

<mosaic_0001>
module attributes {stable_mosaic.version = 11 : i64} {
  func.func @_mean_pool_kernel_vpu(%arg0: i32, %arg1: i32, %arg2: memref<2x8x32xf32, #tpu.memory_space<vmem>>, %arg3: memref<1x8x2xf32, #tpu.memory_space<vmem>>, %arg4: memref<2x1x1xf32, #tpu.memory_space<vmem>>, %arg5: memref<2x1x32xf32, #tpu.memory_space<vmem>>, %arg6: memref<2x1x32xf32, #tpu.memory_space<vmem>>) attributes {dimension_semantics = [#tpu.dimension_semantics<parallel>, #tpu.dimension_semantics<arbitrary>], iteration_bounds = array<i64: 1, 1>, scalar_prefetch = 0 : i64, scratch_operands = 1 : i64, tpu.core_type = #tpu.core_type<tc>, window_params = [{transform_indices = @transform_0, window_bounds = array<i64: 2, 8, 32>}, {transform_indices = @transform_1, window_bounds = array<i64: 1, 8, 2>}, {transform_indices = @transform_2, window_bounds = array<i64: 2, 1, 1>}, {transform_indices = @transform_3, window_bounds = array<i64: 2, 1, 32>}]} {
    %c0_i32 = arith.constant 0 : i32
    %0 = arith.cmpi eq, %arg1, %c0_i32 : i32
    %1 = arith.extui %0 : i1 to i32
    %c0_i32_0 = arith.constant 0 : i32
    %2 = arith.cmpi ne, %1, %c0_i32_0 : i32
    scf.if %2 {
      %cst_23 = arith.constant 0.000000e+00 : f32
      %34 = vector.broadcast %cst_23 : f32 to vector<2x1x32xf32>
      %c0_24 = arith.constant 0 : index
      %c0_25 = arith.constant 0 : index
      %c0_26 = arith.constant 0 : index
      %35 = vector.load %arg6[%c0_24, %c0_25, %c0_26] : memref<2x1x32xf32, #tpu.memory_space<vmem>>, vector<2x1x32xf32>
      tpu.vector_store %arg6[%c0_24, %c0_25, %c0_26], %34 {strides = array<i32>} : memref<2x1x32xf32, #tpu.memory_space<vmem>>, vector<2x1x32xf32>,
    } else {
    }
    %c0 = arith.constant 0 : index
    %c0_1 = arith.constant 0 : index
    %c0_2 = arith.constant 0 : index
    %3 = vector.load %arg3[%c0, %c0_1, %c0_2] : memref<1x8x2xf32, #tpu.memory_space<vmem>>, vector<1x8x2xf32>
    %4 = vector.shape_cast %3 : vector<1x8x2xf32> to vector<8x2xf32>
    %5 = vector.extract_strided_slice %4 {offsets = [0, 0], sizes = [8, 1], strides = [1, 1]} : vector<8x2xf32> to vector<8x1xf32>
    %c0_3 = arith.constant 0 : index
    %c0_4 = arith.constant 0 : index
    %c0_5 = arith.constant 0 : index
    %6 = vector.load %arg2[%c0_3, %c0_4, %c0_5] : memref<2x8x32xf32, #tpu.memory_space<vmem>>, vector<1x8x32xf32>
    %7 = vector.shape_cast %6 : vector<1x8x32xf32> to vector<8x32xf32>
    %c0_6 = arith.constant 0 : index
    %c0_7 = arith.constant 0 : index
    %c0_8 = arith.constant 0 : index
    %8 = vector.load %arg6[%c0_6, %c0_7, %c0_8] : memref<2x1x32xf32, #tpu.memory_space<vmem>>, vector<1x1x32xf32>
    %9 = vector.shape_cast %8 : vector<1x1x32xf32> to vector<1x32xf32>
    %10 = vector.broadcast %5 : vector<8x1xf32> to vector<8x32xf32>
    %11 = arith.mulf %7, %10 : vector<8x32xf32>
    %cst = arith.constant dense<0.000000e+00> : vector<32xf32>
    %12 = vector.multi_reduction <add>, %11, %cst [0] : vector<8x32xf32> to vector<32xf32>
    %13 = vector.shape_cast %12 : vector<32xf32> to vector<1x32xf32>
    %14 = arith.addf %9, %13 : vector<1x32xf32>
    %c0_9 = arith.constant 0 : index
    %c0_10 = arith.constant 0 : index
    %c0_11 = arith.constant 0 : index
    %15 = vector.load %arg6[%c0_9, %c0_10, %c0_11] : memref<2x1x32xf32, #tpu.memory_space<vmem>>, vector<1x1x32xf32>
    %16 = vector.shape_cast %15 : vector<1x1x32xf32> to vector<1x32xf32>
    %17 = vector.shape_cast %14 : vector<1x32xf32> to vector<1x1x32xf32>
    tpu.vector_store %arg6[%c0_9, %c0_10, %c0_11], %17 {strides = array<i32>} : memref<2x1x32xf32, #tpu.memory_space<vmem>>, vector<1x1x32xf32>,
    %18 = vector.extract_strided_slice %4 {offsets = [0, 1], sizes = [8, 1], strides = [1, 1]} : vector<8x2xf32> to vector<8x1xf32>
    %c1 = arith.constant 1 : index
    %c0_12 = arith.constant 0 : index
    %c0_13 = arith.constant 0 : index
    %19 = vector.load %arg2[%c1, %c0_12, %c0_13] : memref<2x8x32xf32, #tpu.memory_space<vmem>>, vector<1x8x32xf32>
    %20 = vector.shape_cast %19 : vector<1x8x32xf32> to vector<8x32xf32>
    %c1_14 = arith.constant 1 : index
    %c0_15 = arith.constant 0 : index
    %c0_16 = arith.constant 0 : index
    %21 = vector.load %arg6[%c1_14, %c0_15, %c0_16] : memref<2x1x32xf32, #tpu.memory_space<vmem>>, vector<1x1x32xf32>
    %22 = vector.shape_cast %21 : vector<1x1x32xf32> to vector<1x32xf32>
    %23 = vector.broadcast %18 : vector<8x1xf32> to vector<8x32xf32>
    %24 = arith.mulf %20, %23 : vector<8x32xf32>
    %cst_17 = arith.constant dense<0.000000e+00> : vector<32xf32>
    %25 = vector.multi_reduction <add>, %24, %cst_17 [0] : vector<8x32xf32> to vector<32xf32>
    %26 = vector.shape_cast %25 : vector<32xf32> to vector<1x32xf32>
    %27 = arith.addf %22, %26 : vector<1x32xf32>
    %c1_18 = arith.constant 1 : index
    %c0_19 = arith.constant 0 : index
    %c0_20 = arith.constant 0 : index
    %28 = vector.load %arg6[%c1_18, %c0_19, %c0_20] : memref<2x1x32xf32, #tpu.memory_space<vmem>>, vector<1x1x32xf32>
    %29 = vector.shape_cast %28 : vector<1x1x32xf32> to vector<1x32xf32>
    %30 = vector.shape_cast %27 : vector<1x32xf32> to vector<1x1x32xf32>
    tpu.vector_store %arg6[%c1_18, %c0_19, %c0_20], %30 {strides = array<i32>} : memref<2x1x32xf32, #tpu.memory_space<vmem>>, vector<1x1x32xf32>,
    %c0_i32_21 = arith.constant 0 : i32
    %31 = arith.cmpi eq, %arg1, %c0_i32_21 : i32
    %32 = arith.extui %31 : i1 to i32
    %c0_i32_22 = arith.constant 0 : i32
    %33 = arith.cmpi ne, %32, %c0_i32_22 : i32
    scf.if %33 {
      %c0_23 = arith.constant 0 : index
      %c0_24 = arith.constant 0 : index
      %c0_25 = arith.constant 0 : index
      %34 = vector.load %arg6[%c0_23, %c0_24, %c0_25] : memref<2x1x32xf32, #tpu.memory_space<vmem>>, vector<2x1x32xf32>
      %c0_26 = arith.constant 0 : index
      %c0_27 = arith.constant 0 : index
      %c0_28 = arith.constant 0 : index
      %35 = vector.load %arg4[%c0_26, %c0_27, %c0_28] : memref<2x1x1xf32, #tpu.memory_space<vmem>>, vector<2x1x1xf32>
      %36 = vector.broadcast %35 : vector<2x1x1xf32> to vector<2x1x32xf32>
      %37 = arith.divf %34, %36 : vector<2x1x32xf32>
      %c0_29 = arith.constant 0 : index
      %c0_30 = arith.constant 0 : index
      %c0_31 = arith.constant 0 : index
      %38 = vector.load %arg5[%c0_29, %c0_30, %c0_31] : memref<2x1x32xf32, #tpu.memory_space<vmem>>, vector<2x1x32xf32>
      tpu.vector_store %arg5[%c0_29, %c0_30, %c0_31], %37 {strides = array<i32>} : memref<2x1x32xf32, #tpu.memory_space<vmem>>, vector<2x1x32xf32>,
    } else {
    }
    return
  }
  func.func @transform_0(%arg0: i32, %arg1: i32) -> (i32, i32, i32) {
    %c0_i32 = arith.constant 0 : i32
    %c0_i32_0 = arith.constant 0 : i32
    return %arg0, %arg1, %c0_i32 : i32, i32, i32
  }
  func.func @transform_1(%arg0: i32, %arg1: i32) -> (i32, i32, i32) {
    %c0_i32 = arith.constant 0 : i32
    %c0_i32_0 = arith.constant 0 : i32
    return %arg0, %arg1, %c0_i32 : i32, i32, i32
  }
  func.func @transform_2(%arg0: i32, %arg1: i32) -> (i32, i32, i32) {
    %c0_i32 = arith.constant 0 : i32
    %c0_i32_0 = arith.constant 0 : i32
    %c0_i32_1 = arith.constant 0 : i32
    return %arg0, %c0_i32, %c0_i32_0 : i32, i32, i32
  }
  func.func @transform_3(%arg0: i32, %arg1: i32) -> (i32, i32, i32) {
    %c0_i32 = arith.constant 0 : i32
    %c0_i32_0 = arith.constant 0 : i32
    %c0_i32_1 = arith.constant 0 : i32
    return %arg0, %c0_i32, %c0_i32_0 : i32, i32, i32
  }
}

</mosaic_0001>

<llo_original>
// kernel: tpu_custom_call.1
$region0: #{tpu_custom_call.1}
  #allocation0 [shape = 'u32[]', space=smem, size = 0x4, offset = 0x4, fixed_abs, tag = 'smem constant byte address 0x4 - core index']
  #allocation1 [shape = 'u32[144,128]{1,0:T(1,128)}', space=vmem, size = 0x12000, scoped, tag = 'internal scratch']
  #allocation2 [shape = 'f32[2,1,32]{2,1,0:T(1,128)}', space=vmem, size = 0x400, scoped, tag = 'scratch operand']
  %s0 = inlined_call_operand.hbm [shape: f32[2,8,32], index: 0, kind: input, shape index: {}]
  %s1 = inlined_call_operand.vmem [shape: f32[1,8,2], index: 1, kind: input, shape index: {}]
  %s2 = inlined_call_operand.vmem [shape: f32[2,1,1], index: 2, kind: input, shape index: {}]
  %s3 = inlined_call_operand.hbm [shape: f32[2,1,32], index: 3, kind: output, shape index: {}]
  %s4 = sld [smem:[#allocation0]]
  $region34: #{tpu_custom_call.1} parent=0
    _
  %s6 = ssub.s32 1, %s4
  %s7 = scalar_select 0, %s6, %s4
  $region1: #{tpu_custom_call.1} parent=0
    #allocation3 [shape = 'u8[8192]{0}', space=vmem, size = 0x2000, scoped, tag = 'input window, operand 0, single buffered']
    #allocation4 [shape = 's32[1]{0}', space=sflag, size = 0x4, scoped, tag = 'scoped memory for tpu_custom_call.1']
    #allocation5 [shape = 's32[1]{0}', space=sflag, size = 0x4, scoped, tag = 'scoped memory for tpu_custom_call.1']
    #allocation6 [shape = 'u8[1024]{0}', space=vmem, size = 0x400, scoped, tag = 'output window, operand 0, single buffered']
    %8 = vsyncpa [#allocation4], 0
    %9 = vsyncpa [#allocation5], 0
    // Predicated region
    $region2: #{tpu_custom_call.1} parent=1 // pred_check
      _
    $region3: #{tpu_custom_call.1} parent=1 // pred_check_branch
      %11 = sbr.rel (0) target = $region5
    $region4: #{tpu_custom_call.1} parent=1 // pred_region
      %s13 = ssub.s32 256, 256
      %14 = vsyncadd [#allocation4], %s13
      %s15 = sshll.u32 [#allocation3], 4
      %s16 = int_to_ptr.vmem [resolvable:$true] %s15
      %21 = dma.hbm_to_vmem [thread:$0]  %s0, 256, %s16, [#allocation4], 128, 128, 8
    $region5: #{tpu_custom_call.1} parent=1 // pred_fallthru
      _
    // Predicated region
    $region6: #{tpu_custom_call.1} parent=1 // pred_check
      _
    $region7: #{tpu_custom_call.1} parent=1 // pred_check_branch
      %23 = sbr.rel (0) target = $region9
    $region8: #{tpu_custom_call.1} parent=1 // pred_region
      _
    $region9: #{tpu_custom_call.1} parent=1 // pred_fallthru
      _
    // Predicated region
    $region10: #{tpu_custom_call.1} parent=1 // pred_check
      _
    $region11: #{tpu_custom_call.1} parent=1 // pred_check_branch
      %25 = sbr.rel (0) target = $region13
    $region12: #{tpu_custom_call.1} parent=1 // pred_region
      _
    $region13: #{tpu_custom_call.1} parent=1 // pred_fallthru
      _
    // Predicated region
    $region14: #{tpu_custom_call.1} parent=1 // pred_check
      _
    $region15: #{tpu_custom_call.1} parent=1 // pred_check_branch
      %27 = sbr.rel (0) target = $region17
    $region16: #{tpu_custom_call.1} parent=1 // pred_region
      %28 = dma.done [#allocation4], 256
    $region17: #{tpu_custom_call.1} parent=1 // pred_fallthru
      _
    %p29 = scmp.eq.s32.totalorder 0, 0
    // Predicated region
    $region18: #{tpu_custom_call.1} parent=1 // pred_check
      %p30 = pneg %p29
    $region19: #{tpu_custom_call.1} parent=1 // pred_check_branch
      %32 = sbr.rel (%p30) target = $region21
    $region20: #{tpu_custom_call.1} parent=1 // pred_region
      %vm33 = vcmask 253952
      %34 = vst.msk [vmem:[#allocation2] sm:$0x1] %vm33, 0.0
      %35 = vst.msk [vmem:[#allocation2 + $0x1] sm:$0x1] %vm33, 0.0
    $region21: #{tpu_custom_call.1} parent=1 // pred_fallthru
      _
    %v36 = vld [vmem:[%s1] sm:$0xff]
    %v37 = vld [vmem:[#allocation3] sm:$0xff]
    %v38 = vld [vmem:[#allocation2] sm:$0x1]
    %40 = vset.pattern.permute.xlu0 0
    %41 = vperm.xlu0 %40, %v36
    %v42 = vpop.permute.xlu0 %41
    %v44 = vmul.f32 %v37, %v42
    %vm45 = vcmask 261120
    %v46 = vsel %vm45, %v44, 0.0
    %v47 = vrot.slane %v46, 4
    %v48 = vadd.f32 %v46, %v47
    %v49 = vrot.slane %v48, 2
    %v50 = vadd.f32 %v48, %v49
    %v51 = vrot.slane %v50, 1
    %v52 = vadd.f32 %v50, %v51
    %v53 = vadd.f32 %v38, %v52
    %vm54 = vcmask 253952
    %55 = vst.msk [vmem:[#allocation2] sm:$0x1] %vm54, %v53
    %s56 = scalar_lea.vmem [#allocation3], 8
    %v57 = vld [vmem:[%s56] sm:$0xff]
    %s58 = scalar_lea.vmem [#allocation2], 1
    %v59 = vld [vmem:[%s58] sm:$0x1]
    %60 = vset.pattern.permute.xlu0 1
    %61 = vperm.xlu0 %60, %v36
    %v62 = vpop.permute.xlu0 %61
    %v64 = vmul.f32 %v57, %v62
    %v65 = vsel %vm45, %v64, 0.0
    %v66 = vrot.slane %v65, 4
    %v67 = vadd.f32 %v65, %v66
    %v68 = vrot.slane %v67, 2
    %v69 = vadd.f32 %v67, %v68
    %v70 = vrot.slane %v69, 1
    %v71 = vadd.f32 %v69, %v70
    %v72 = vadd.f32 %v59, %v71
    %73 = vst.msk [vmem:[%s58] sm:$0x1] %vm54, %v72
    // Predicated region
    $region22: #{tpu_custom_call.1} parent=1 // pred_check
      %p74 = pneg %p29
    $region23: #{tpu_custom_call.1} parent=1 // pred_check_branch
      %76 = sbr.rel (%p74) target = $region25
    $region24: #{tpu_custom_call.1} parent=1 // pred_region
      %v77 = vld [vmem:[#allocation2] sm:$0x1]
      %v78 = vld [vmem:[#allocation2 + $0x1] sm:$0x1]
      %v79 = vld [vmem:[%s2] sm:$0x1]
      %v80 = vld [vmem:[%s2 + $0x1] sm:$0x1]
      %82 = vset.pattern.permute.xlu0 0
      %83 = vperm.xlu0 %82, %v79
      %v84 = vpop.permute.xlu0 %83
      %v86 = vlaneseq
      %v87 = vshrl.u32 %v86, 7
      %v88 = vsub.s32 0, %v87
      %v89 = vrot.slane %v84, %v88
      %91 = vset.pattern.permute.xlu0 0
      %92 = vperm.xlu0 %91, %v80
      %v93 = vpop.permute.xlu0 %92
      %v95 = vlaneseq
      %v96 = vshrl.u32 %v95, 7
      %v97 = vsub.s32 0, %v96
      %v98 = vrot.slane %v93, %v97
      %v99 = vrcp.pop %v89
      %v100 = vmul.f32 %v77, %v99
      %v101 = vrcp.pop %v98
      %v102 = vmul.f32 %v78, %v101
      %103 = vst.msk [vmem:[#allocation6] sm:$0x1] %vm54, %v100
      %104 = vst.msk [vmem:[#allocation6 + $0x1] sm:$0x1] %vm54, %v102
    $region25: #{tpu_custom_call.1} parent=1 // pred_fallthru
      _
    // Predicated region
    $region26: #{tpu_custom_call.1} parent=1 // pred_check
      _
    $region27: #{tpu_custom_call.1} parent=1 // pred_check_branch
      %106 = sbr.rel (0) target = $region29
    $region28: #{tpu_custom_call.1} parent=1 // pred_region
      %s108 = ssub.s32 32, 32
      %109 = vsyncadd [#allocation5], %s108
      %s110 = sshll.u32 [#allocation6], 4
      %s111 = int_to_ptr.vmem [resolvable:$true] %s110
      %116 = dma.vmem_to_hbm [thread:$0]  %s111, 32, %s3, [#allocation5], 16, 16, 1
    $region29: #{tpu_custom_call.1} parent=1 // pred_fallthru
      _
    // Predicated region
    $region30: #{tpu_custom_call.1} parent=1 // pred_check
      _
    $region31: #{tpu_custom_call.1} parent=1 // pred_check_branch
      %118 = sbr.rel (0) target = $region33
    $region32: #{tpu_custom_call.1} parent=1 // pred_region
      %119 = dma.done [#allocation5], 32
    $region33: #{tpu_custom_call.1} parent=1 // pred_fallthru
      _
    %120 = vsyncpa [#allocation4], 1
    %121 = vsyncpa [#allocation5], 1

</llo_original>
